<compile_context>
chip_gen: v6e
topology: v6e:2x2x1
jax: 0.10.0
libtpu: 0.0.40
codegen_flags: <defaults>
</compile_context>

<pallas_src>
import jax
import jax.numpy as jnp
from jax.experimental import pallas as pl
from jax.experimental.pallas import tpu as pltpu

_LANE = 128
_SUBLANE = 8


def _pd_kernel(gains_ref, theta_ref, theta_dot_ref, u_ref):
    # gains_ref:            SMEM (2,) f32  -> [k_p, k_d]   (scalar-prefetched)
    # theta_ref/theta_dot:  VMEM (br, 128) lane-dense tiles
    # u_ref:                VMEM (br, 128) lane-dense output tile
    k_p = gains_ref[0]
    k_d = gains_ref[1]
    u = -(k_p * theta_ref[...] + k_d * theta_dot_ref[...])
    u_ref[...] = u.astype(u_ref.dtype)


def pd_controller(xs, k_p, k_d, *, block_rows=512):
    """xs: (N, 2) float array -> (N, 1) control, u = -(k_p*theta + k_d*theta_dot)."""
    n = xs.shape[0]
    dtype = xs.dtype

    # --- lane-dense layout prep (pure layout plumbing, outside the kernel) ---
    rows = pl.cdiv(n, _LANE)                              # rows of 128 lanes
    rows_r8 = ((rows + _SUBLANE - 1) // _SUBLANE) * _SUBLANE
    br = max(_SUBLANE, min(block_rows, rows_r8))          # multiple of 8
    rows_padded = ((rows_r8 + br - 1) // br) * br
    n_padded = rows_padded * _LANE

    theta = xs[:, 0]
    theta_dot = xs[:, 1]
    pad = n_padded - n
    if pad:
        theta = jnp.pad(theta, (0, pad))
        theta_dot = jnp.pad(theta_dot, (0, pad))
    theta = theta.reshape(rows_padded, _LANE)
    theta_dot = theta_dot.reshape(rows_padded, _LANE)

    # Gains always live as 32-bit scalars in SMEM, regardless of xs.dtype.
    gains = jnp.array([k_p, k_d], dtype=jnp.float32)

    grid = (rows_padded // br,)

    out = pl.pallas_call(
        _pd_kernel,
        out_shape=jax.ShapeDtypeStruct((rows_padded, _LANE), dtype),
        grid_spec=pltpu.PrefetchScalarGridSpec(
            num_scalar_prefetch=1,                        # gains -> SMEM
            grid=grid,
            in_specs=[
                pl.BlockSpec((br, _LANE), lambda i, gains: (i, 0)),
                pl.BlockSpec((br, _LANE), lambda i, gains: (i, 0)),
            ],
            out_specs=pl.BlockSpec((br, _LANE), lambda i, gains: (i, 0)),
        ),
        compiler_params=pltpu.CompilerParams(
            dimension_semantics=("parallel",),            # shards across TCs on v7x
        ),
    )(gains, theta, theta_dot)

    # Back to the module's (N, 1) output shape.
    return out.reshape(n_padded)[:n][:, None]


if __name__ == "__main__":
    key = jax.random.PRNGKey(0)
    N = 8
    xs = jax.random.normal(key, (N, 2), dtype=jnp.float32)

    k_p, k_d = 3.0, 0.5

    u = pd_controller(xs, k_p, k_d)
    jax.block_until_ready(u)

    # Reference (pure JAX, mirrors the PyTorch forward).
    thetas, theta_dots = xs.T
    u_ref = (-(k_p * thetas + k_d * theta_dots))[:, None]

    assert u.shape == (N, 1), u.shape
    assert jnp.allclose(u, u_ref, atol=1e-6), (u, u_ref)

    # Sanity check at a larger, multi-tile size exercising the grid.
    N2 = 3000
    xs2 = jax.random.normal(jax.random.PRNGKey(1), (N2, 2), dtype=jnp.float32)
    u2 = pd_controller(xs2, k_p, k_d)
    jax.block_until_ready(u2)
    t2, td2 = xs2.T
    u2_ref = (-(k_p * t2 + k_d * td2))[:, None]
    assert u2.shape == (N2, 1)
    assert jnp.allclose(u2, u2_ref, atol=1e-6)

    print("KERNEL_OK")
</pallas_src>

<mosaic_0001>
module attributes {stable_mosaic.version = 11 : i64} {
  func.func @_pd_kernel(%arg0: i32, %arg1: memref<2xf32, #tpu.memory_space<smem>>, %arg2: memref<8x128xf32, #tpu.memory_space<vmem>>, %arg3: memref<8x128xf32, #tpu.memory_space<vmem>>, %arg4: memref<8x128xf32, #tpu.memory_space<vmem>>) attributes {dimension_semantics = [#tpu.dimension_semantics<parallel>], iteration_bounds = array<i64: 1>, scalar_prefetch = 1 : i64, scratch_operands = 0 : i64, tpu.core_type = #tpu.core_type<tc>, window_params = [{transform_indices = @transform_0, window_bounds = array<i64: 8, 128>}, {transform_indices = @transform_1, window_bounds = array<i64: 8, 128>}, {transform_indices = @transform_2, window_bounds = array<i64: 8, 128>}]} {
    %c0 = arith.constant 0 : index
    %0 = memref.load %arg1[%c0] : memref<2xf32, #tpu.memory_space<smem>>
    %c1 = arith.constant 1 : index
    %1 = memref.load %arg1[%c1] : memref<2xf32, #tpu.memory_space<smem>>
    %c0_0 = arith.constant 0 : index
    %c0_1 = arith.constant 0 : index
    %2 = vector.load %arg2[%c0_0, %c0_1] : memref<8x128xf32, #tpu.memory_space<vmem>>, vector<8x128xf32>
    %3 = vector.broadcast %0 : f32 to vector<8x128xf32>
    %4 = arith.mulf %3, %2 : vector<8x128xf32>
    %c0_2 = arith.constant 0 : index
    %c0_3 = arith.constant 0 : index
    %5 = vector.load %arg3[%c0_2, %c0_3] : memref<8x128xf32, #tpu.memory_space<vmem>>, vector<8x128xf32>
    %6 = vector.broadcast %1 : f32 to vector<8x128xf32>
    %7 = arith.mulf %6, %5 : vector<8x128xf32>
    %8 = arith.addf %4, %7 : vector<8x128xf32>
    %cst = arith.constant 0.000000e+00 : f32
    %9 = vector.broadcast %cst : f32 to vector<8x128xf32>
    %10 = arith.subf %9, %8 : vector<8x128xf32>
    %c0_4 = arith.constant 0 : index
    %c0_5 = arith.constant 0 : index
    %11 = vector.load %arg4[%c0_4, %c0_5] : memref<8x128xf32, #tpu.memory_space<vmem>>, vector<8x128xf32>
    tpu.vector_store %arg4[%c0_4, %c0_5], %10 {strides = array<i32>} : memref<8x128xf32, #tpu.memory_space<vmem>>, vector<8x128xf32>,
    return
  }
  func.func @transform_0(%arg0: i32, %arg1: memref<2xf32, #tpu.memory_space<smem>>) -> (i32, i32) {
    %c0_i32 = arith.constant 0 : i32
    %c0_i32_0 = arith.constant 0 : i32
    return %arg0, %c0_i32 : i32, i32
  }
  func.func @transform_1(%arg0: i32, %arg1: memref<2xf32, #tpu.memory_space<smem>>) -> (i32, i32) {
    %c0_i32 = arith.constant 0 : i32
    %c0_i32_0 = arith.constant 0 : i32
    return %arg0, %c0_i32 : i32, i32
  }
  func.func @transform_2(%arg0: i32, %arg1: memref<2xf32, #tpu.memory_space<smem>>) -> (i32, i32) {
    %c0_i32 = arith.constant 0 : i32
    %c0_i32_0 = arith.constant 0 : i32
    return %arg0, %c0_i32 : i32, i32
  }
}

</mosaic_0001>

<llo_original>
// kernel: tpu_custom_call.1
$region0: #{tpu_custom_call.1}
  #allocation0 [shape = 'u32[]', space=smem, size = 0x4, offset = 0x4, fixed_abs, tag = 'smem constant byte address 0x4 - core index']
  #allocation1 [shape = 'u32[144,128]{1,0:T(1,128)}', space=vmem, size = 0x12000, scoped, tag = 'internal scratch']
  #allocation2 [shape = 's32[1]{0}', space=sflag, size = 0x4, scoped, tag = 'scoped memory for tpu_custom_call.1']
  #allocation3 [shape = 'u8[512]{0}', space=smem, size = 0x200, scoped, tag = 'prefetched SMEM operand 0']
  %s0 = inlined_call_operand.hbm [shape: f32[2], index: 0, kind: input, shape index: {}]
  %s1 = inlined_call_operand.hbm [shape: f32[8,128], index: 1, kind: input, shape index: {}]
  %s2 = inlined_call_operand.hbm [shape: f32[8,128], index: 2, kind: input, shape index: {}]
  %s3 = inlined_call_operand.hbm [shape: f32[8,128], index: 3, kind: output, shape index: {}]
  %s4 = sld [smem:[#allocation0]]
  $region26: #{tpu_custom_call.1} parent=0
    _
  %s6 = ssub.s32 1, %s4
  %s7 = scalar_select 0, %s6, %s4
  %9 = dma.hbm_to_smem %s0, 16, [#allocation3], [#allocation2]
  %10 = dma.done [#allocation2], 16
  %11 = sfence
  $region1: #{tpu_custom_call.1} parent=0
    #allocation4 [shape = 'u8[4096]{0}', space=vmem, size = 0x1000, scoped, tag = 'input window, operand 1, single buffered']
    #allocation5 [shape = 's32[1]{0}', space=sflag, size = 0x4, scoped, tag = 'scoped memory for tpu_custom_call.1']
    #allocation6 [shape = 's32[1]{0}', space=sflag, size = 0x4, scoped, tag = 'scoped memory for tpu_custom_call.1']
    #allocation7 [shape = 'u8[4096]{0}', space=vmem, size = 0x1000, scoped, tag = 'input window, operand 2, single buffered']
    #allocation8 [shape = 's32[1]{0}', space=sflag, size = 0x4, scoped, tag = 'scoped memory for tpu_custom_call.1']
    #allocation9 [shape = 'u8[4096]{0}', space=vmem, size = 0x1000, scoped, tag = 'output window, operand 0, single buffered']
    %12 = vsyncpa [#allocation5], 0
    %13 = vsyncpa [#allocation8], 0
    %14 = vsyncpa [#allocation6], 0
    // Predicated region
    $region2: #{tpu_custom_call.1} parent=1 // pred_check
      _
    $region3: #{tpu_custom_call.1} parent=1 // pred_check_branch
      %16 = sbr.rel (0) target = $region5
    $region4: #{tpu_custom_call.1} parent=1 // pred_region
      %s18 = ssub.s32 128, 128
      %19 = vsyncadd [#allocation5], %s18
      %s21 = sshll.u32 [#allocation4], 4
      %s22 = int_to_ptr.vmem [resolvable:$true] %s21
      %24 = dma.hbm_to_vmem [thread:$0]  %s1, 128, %s22, [#allocation5]
    $region5: #{tpu_custom_call.1} parent=1 // pred_fallthru
      _
    // Predicated region
    $region6: #{tpu_custom_call.1} parent=1 // pred_check
      _
    $region7: #{tpu_custom_call.1} parent=1 // pred_check_branch
      %26 = sbr.rel (0) target = $region9
    $region8: #{tpu_custom_call.1} parent=1 // pred_region
      %s28 = ssub.s32 128, 128
      %29 = vsyncadd [#allocation8], %s28
      %s31 = sshll.u32 [#allocation7], 4
      %s32 = int_to_ptr.vmem [resolvable:$true] %s31
      %34 = dma.hbm_to_vmem [thread:$0]  %s2, 128, %s32, [#allocation8]
    $region9: #{tpu_custom_call.1} parent=1 // pred_fallthru
      _
    // Predicated region
    $region10: #{tpu_custom_call.1} parent=1 // pred_check
      _
    $region11: #{tpu_custom_call.1} parent=1 // pred_check_branch
      %36 = sbr.rel (0) target = $region13
    $region12: #{tpu_custom_call.1} parent=1 // pred_region
      %37 = dma.done [#allocation5], 128
    $region13: #{tpu_custom_call.1} parent=1 // pred_fallthru
      _
    // Predicated region
    $region14: #{tpu_custom_call.1} parent=1 // pred_check
      _
    $region15: #{tpu_custom_call.1} parent=1 // pred_check_branch
      %39 = sbr.rel (0) target = $region17
    $region16: #{tpu_custom_call.1} parent=1 // pred_region
      %40 = dma.done [#allocation8], 128
    $region17: #{tpu_custom_call.1} parent=1 // pred_fallthru
      _
    %s41 = sld [smem:[#allocation3]]
    %s42 = sld [smem:[#allocation3 + $0x1]]
    %v43 = vld [vmem:[#allocation4] sm:$0xff]
    %v44 = vstv %s41
    %v45 = vmul.f32 %v44, %v43
    %v46 = vld [vmem:[#allocation7] sm:$0xff]
    %v47 = vstv %s42
    %v48 = vmul.f32 %v47, %v46
    %v49 = vadd.f32 %v45, %v48
    %v50 = vsub.f32 0.0, %v49
    %51 = vst [vmem:[#allocation9] sm:$0xff] %v50
    // Predicated region
    $region18: #{tpu_custom_call.1} parent=1 // pred_check
      _
    $region19: #{tpu_custom_call.1} parent=1 // pred_check_branch
      %53 = sbr.rel (0) target = $region21
    $region20: #{tpu_custom_call.1} parent=1 // pred_region
      %s55 = ssub.s32 128, 128
      %56 = vsyncadd [#allocation6], %s55
      %s58 = sshll.u32 [#allocation9], 4
      %s59 = int_to_ptr.vmem [resolvable:$true] %s58
      %61 = dma.vmem_to_hbm [thread:$0]  %s59, 128, %s3, [#allocation6]
    $region21: #{tpu_custom_call.1} parent=1 // pred_fallthru
      _
    // Predicated region
    $region22: #{tpu_custom_call.1} parent=1 // pred_check
      _
    $region23: #{tpu_custom_call.1} parent=1 // pred_check_branch
      %63 = sbr.rel (0) target = $region25
    $region24: #{tpu_custom_call.1} parent=1 // pred_region
      %64 = dma.done [#allocation6], 128
    $region25: #{tpu_custom_call.1} parent=1 // pred_fallthru
      _
    %65 = vsyncpa [#allocation5], 1
    %66 = vsyncpa [#allocation8], 1
    %67 = vsyncpa [#allocation6], 1

</llo_original>
